<compile_context>
chip_gen: v6e
topology: v6e:2x2x1
jax: 0.10.0
libtpu: 0.0.40
codegen_flags: <defaults>
</compile_context>

<pallas_src>
import jax
import jax.numpy as jnp
from jax.experimental import pallas as pl
from jax.experimental.pallas import tpu as pltpu


def _round_up(x, m):
    return (x + m - 1) // m * m


def _pick_rows_per_tile(H, W, KC, F_pad, in_itemsize, budget_bytes):
    """Largest divisor r of H whose per-step working set fits `budget_bytes`,
    preferring r*W to be a multiple of 8 (sublane-aligned matmul M dim)."""

    def fits(r):
        tm = r * W
        # double-buffered input tile + f32 conv/act intermediates (rough upper bound)
        need = 2 * tm * KC * in_itemsize + 2 * tm * F_pad * 4
        return need <= budget_bytes

    cands = [r for r in range(1, H + 1) if H % r == 0 and fits(r)]
    if not cands:
        return 1
    aligned = [r for r in cands if (r * W) % 8 == 0]
    return max(aligned) if aligned else max(cands)


def class_model_forward(x, params, *, rows_per_tile=None,
                        compute_dtype=jnp.bfloat16,
                        vmem_tile_budget_bytes=24 * 1024 * 1024):
    """x: [B, C, H, W] float32 (NCHW, like PyTorch).  Returns logits [B, n_class]."""
    B, C, H, W = x.shape
    conv_w = params["conv_w"]          # [F, C, 3, 3]  (PyTorch OIHW)
    conv_b = params["conv_b"]          # [F]
    cls_w = params["cls_w"]            # [n_class, F]  (PyTorch layout)
    cls_b = params["cls_b"]            # [n_class]
    F_feat = conv_w.shape[0]
    n_class = cls_w.shape[0]

    KC = 9 * C                          # channel-only im2col width
    HW = H * W
    F_pad = _round_up(F_feat, 128)      # lane-dense feature width
    NC_pad = _round_up(n_class, 128)    # lane-dense class width
    in_itemsize = jnp.dtype(compute_dtype).itemsize

    if rows_per_tile is None:
        rows_per_tile = _pick_rows_per_tile(H, W, KC, F_pad, in_itemsize,
                                            vmem_tile_budget_bytes)
    assert H % rows_per_tile == 0, "rows_per_tile must divide H"
    n_t = H // rows_per_tile            # reduction-axis grid extent (1 at demo sizes)
    tm = rows_per_tile * W              # rows of the flattened tile
    inv_hw = 1.0 / float(HW)

    # ---- host-side layout prep ---------------------------------------------------
    # Channel-only im2col: x_im[b, i*W + j, k*C + c] = xpad[b, i+kh, j+kw, c], k=kh*3+kw.
    x_nhwc = jnp.transpose(x, (0, 2, 3, 1))                          # [B, H, W, C]
    xp = jnp.pad(x_nhwc, ((0, 0), (1, 1), (1, 1), (0, 0)))           # [B, H+2, W+2, C]
    taps = [xp[:, kh:kh + H, kw:kw + W, :] for kh in range(3) for kw in range(3)]
    x_im = jnp.concatenate(taps, axis=-1).reshape(B, HW, KC).astype(compute_dtype)

    # Conv weight -> [9*C, F_pad], row index kh*3C + kw*C + c matches the tap order.
    w_mat = jnp.transpose(conv_w, (2, 3, 1, 0)).reshape(KC, F_feat)
    w_mat = jnp.pad(w_mat, ((0, 0), (0, F_pad - F_feat))).astype(compute_dtype)
    bconv = jnp.pad(conv_b, (0, F_pad - F_feat)).reshape(1, F_pad).astype(jnp.float32)

    # Classifier weight/bias, zero-padded to lane-dense shapes (f32; it's tiny and the
    # pooled features it multiplies are f32).
    wcls = jnp.pad(jnp.transpose(cls_w),
                   ((0, F_pad - F_feat), (0, NC_pad - n_class))).astype(jnp.float32)
    bcls = jnp.pad(cls_b, (0, NC_pad - n_class)).reshape(1, NC_pad).astype(jnp.float32)

    # ---- main fused kernel: conv + bias + ReLU + GAP -> pooled features -----------
    def _conv_gap(x_ref, w_ref, b_ref):
        # One K=9C matmul on the MXU, f32 accumulation.
        conv = jnp.dot(x_ref[...], w_ref[...], preferred_element_type=jnp.float32)
        act = jnp.maximum(conv + b_ref[...], 0.0)                    # bias + ReLU, f32
        # GAP partial sum as (1, tm) @ (tm, F_pad) with the mean scale folded in
        # (MXU, avoids a cross-sublane XLU reduce).
        gap_w = jnp.full((1, tm), inv_hw, dtype=jnp.float32)
        return jnp.dot(gap_w, act, preferred_element_type=jnp.float32)

    if n_t == 1:
        # Single pass per image: no accumulator scratch, no pl.when.
        def pooled_kernel(x_ref, w_ref, b_ref, o_ref):
            o_ref[...] = _conv_gap(x_ref, w_ref, b_ref)

        grid = (B,)
        x_map = lambda b: (b, 0, 0)
        c_map = lambda b: (0, 0)
        o_map = lambda b: (b, 0, 0)
        scratch = []
        dims = ("parallel",)
    else:
        # Large-input path: spatial tiles accumulate into a VMEM scratch.
        def pooled_kernel(x_ref, w_ref, b_ref, o_ref, acc_ref):
            t = pl.program_id(1)

            @pl.when(t == 0)
            def _init():
                acc_ref[...] = jnp.zeros_like(acc_ref)

            acc_ref[...] += _conv_gap(x_ref, w_ref, b_ref)

            @pl.when(t == pl.num_programs(1) - 1)
            def _finalize():
                o_ref[...] = acc_ref[...]

        grid = (B, n_t)
        x_map = lambda b, t: (b, t, 0)
        c_map = lambda b, t: (0, 0)
        o_map = lambda b, t: (b, 0, 0)
        scratch = [pltpu.VMEM((1, F_pad), jnp.float32)]
        dims = ("parallel", "arbitrary")   # t must stay innermost + arbitrary

    pooled = pl.pallas_call(
        pooled_kernel,
        out_shape=jax.ShapeDtypeStruct((B, 1, F_pad), jnp.float32),
        grid_spec=pltpu.PrefetchScalarGridSpec(
            num_scalar_prefetch=0,
            grid=grid,
            in_specs=[
                pl.BlockSpec((None, tm, KC), x_map),     # activation tile
                pl.BlockSpec((KC, F_pad), c_map),        # conv weight (constant)
                pl.BlockSpec((1, F_pad), c_map),         # conv bias   (constant)
            ],
            out_specs=pl.BlockSpec((None, 1, F_pad), o_map),
            scratch_shapes=scratch,
        ),
        compiler_params=pltpu.CompilerParams(
            dimension_semantics=dims,                    # batch across TCs on v7x
            vmem_limit_bytes=48 * 1024 * 1024,           # safe under v7x's 64 MiB
        ),
    )(x_im, w_mat, bconv)

    # ---- classifier: one batched, well-shaped matmul in a tiny second kernel ------
    def cls_kernel(p_ref, w_ref, b_ref, o_ref):
        o_ref[...] = (jnp.dot(p_ref[...], w_ref[...],
                              preferred_element_type=jnp.float32) + b_ref[...])

    logits = pl.pallas_call(
        cls_kernel,
        out_shape=jax.ShapeDtypeStruct((B, NC_pad), jnp.float32),
    )(pooled.reshape(B, F_pad), wcls, bcls)

    return logits[:, :n_class]


# ------------------------------ main --------------------------------------------

if __name__ == "__main__":
    B, C, H, W = 2, 3, 16, 16       # small NCHW image batch
    F_FEAT = 32                     # backbone feature width (n_features)
    N_CLASS = 5                     # CFG.class_num stand-in

    kx, kw1, kb1, kw2, kb2 = jax.random.split(jax.random.PRNGKey(0), 5)
    x = jax.random.normal(kx, (B, C, H, W), dtype=jnp.float32)
    params = {
        "conv_w": 0.1 * jax.random.normal(kw1, (F_FEAT, C, 3, 3), dtype=jnp.float32),
        "conv_b": 0.1 * jax.random.normal(kb1, (F_FEAT,), dtype=jnp.float32),
        "cls_w": 0.1 * jax.random.normal(kw2, (N_CLASS, F_FEAT), dtype=jnp.float32),
        "cls_b": 0.1 * jax.random.normal(kb2, (N_CLASS,), dtype=jnp.float32),
    }

    # Default path: tile fits VMEM -> n_t == 1 single-pass kernel, bf16 MXU inputs.
    logits = class_model_forward(x, params)
    jax.block_until_ready(logits)

    # Pure-JAX f32 reference of the same math.
    def ref(x, p):
        out = jax.lax.conv_general_dilated(
            x, p["conv_w"], (1, 1), "SAME",
            dimension_numbers=("NCHW", "OIHW", "NCHW"))
        out = jnp.maximum(out + p["conv_b"][None, :, None, None], 0.0)
        pooled = out.mean(axis=(2, 3))                 # [B, F]
        return pooled @ p["cls_w"].T + p["cls_b"]

    ref_logits = ref(x, params)
    assert logits.shape == (B, N_CLASS)
    # bf16 MXU inputs (per perf review) -> loosened tolerance vs. the f32 reference.
    assert jnp.allclose(logits, ref_logits, atol=2e-2, rtol=2e-2), (
        float(jnp.max(jnp.abs(logits - ref_logits))))

    print("KERNEL_OK")
</pallas_src>

<mosaic_0001>
module attributes {stable_mosaic.version = 11 : i64} {
  func.func @pooled_kernel(%arg0: i32, %arg1: memref<1x256x27xbf16, #tpu.memory_space<vmem>>, %arg2: memref<27x128xbf16, #tpu.memory_space<vmem>>, %arg3: memref<1x128xf32, #tpu.memory_space<vmem>>, %arg4: memref<1x1x128xf32, #tpu.memory_space<vmem>>) attributes {dimension_semantics = [#tpu.dimension_semantics<parallel>], iteration_bounds = array<i64: 2>, scalar_prefetch = 0 : i64, scratch_operands = 0 : i64, tpu.core_type = #tpu.core_type<tc>, window_params = [{transform_indices = @transform_0, window_bounds = array<i64: 1, 256, 27>}, {pipeline_mode = #tpu.pipeline_mode<synchronous>, transform_indices = @transform_1, window_bounds = array<i64: 27, 128>}, {pipeline_mode = #tpu.pipeline_mode<synchronous>, transform_indices = @transform_2, window_bounds = array<i64: 1, 128>}, {transform_indices = @transform_3, window_bounds = array<i64: 1, 1, 128>}]} {
    %c0 = arith.constant 0 : index
    %c0_0 = arith.constant 0 : index
    %c0_1 = arith.constant 0 : index
    %0 = vector.load %arg1[%c0, %c0_0, %c0_1] : memref<1x256x27xbf16, #tpu.memory_space<vmem>>, vector<1x256x27xbf16>
    %1 = vector.shape_cast %0 : vector<1x256x27xbf16> to vector<256x27xbf16>
    %c0_2 = arith.constant 0 : index
    %c0_3 = arith.constant 0 : index
    %2 = vector.load %arg2[%c0_2, %c0_3] : memref<27x128xbf16, #tpu.memory_space<vmem>>, vector<27x128xbf16>
    %cst = arith.constant dense<0.000000e+00> : vector<256x128xf32>
    %3 = tpu.matmul %1, %2, %cst {dimension_numbers = #tpu.dot_dimension_numbers<[1], [0], [0], [1], [0, 0, 1, 1], [], []>} : vector<256x27xbf16>, vector<27x128xbf16>, vector<256x128xf32> -> vector<256x128xf32>
    %c0_4 = arith.constant 0 : index
    %c0_5 = arith.constant 0 : index
    %4 = vector.load %arg3[%c0_4, %c0_5] : memref<1x128xf32, #tpu.memory_space<vmem>>, vector<1x128xf32>
    %5 = vector.broadcast %4 : vector<1x128xf32> to vector<256x128xf32>
    %6 = arith.addf %3, %5 : vector<256x128xf32>
    %cst_6 = arith.constant 0.000000e+00 : f32
    %7 = vector.broadcast %cst_6 : f32 to vector<256x128xf32>
    %8 = arith.maximumf %6, %7 : vector<256x128xf32>
    %cst_7 = arith.constant 3.906250e-03 : f32
    %9 = vector.broadcast %cst_7 : f32 to vector<1x256xf32>
    %cst_8 = arith.constant dense<0.000000e+00> : vector<1x128xf32>
    %10 = tpu.matmul %9, %8, %cst_8 {dimension_numbers = #tpu.dot_dimension_numbers<[1], [0], [0], [1], [0, 0, 1, 1], [], []>} : vector<1x256xf32>, vector<256x128xf32>, vector<1x128xf32> -> vector<1x128xf32>
    %c0_9 = arith.constant 0 : index
    %c0_10 = arith.constant 0 : index
    %c0_11 = arith.constant 0 : index
    %11 = vector.load %arg4[%c0_9, %c0_10, %c0_11] : memref<1x1x128xf32, #tpu.memory_space<vmem>>, vector<1x1x128xf32>
    %12 = vector.shape_cast %11 : vector<1x1x128xf32> to vector<1x128xf32>
    %13 = vector.shape_cast %10 : vector<1x128xf32> to vector<1x1x128xf32>
    tpu.vector_store %arg4[%c0_9, %c0_10, %c0_11], %13 {strides = array<i32>} : memref<1x1x128xf32, #tpu.memory_space<vmem>>, vector<1x1x128xf32>,
    return
  }
  func.func @transform_0(%arg0: i32) -> (i32, i32, i32) {
    %c0_i32 = arith.constant 0 : i32
    %c0_i32_0 = arith.constant 0 : i32
    %c0_i32_1 = arith.constant 0 : i32
    return %arg0, %c0_i32, %c0_i32_0 : i32, i32, i32
  }
  func.func @transform_1(%arg0: i32) -> (i32, i32) {
    %c0_i32 = arith.constant 0 : i32
    %c0_i32_0 = arith.constant 0 : i32
    %c0_i32_1 = arith.constant 0 : i32
    return %c0_i32, %c0_i32_0 : i32, i32
  }
  func.func @transform_2(%arg0: i32) -> (i32, i32) {
    %c0_i32 = arith.constant 0 : i32
    %c0_i32_0 = arith.constant 0 : i32
    %c0_i32_1 = arith.constant 0 : i32
    return %c0_i32, %c0_i32_0 : i32, i32
  }
  func.func @transform_3(%arg0: i32) -> (i32, i32, i32) {
    %c0_i32 = arith.constant 0 : i32
    %c0_i32_0 = arith.constant 0 : i32
    %c0_i32_1 = arith.constant 0 : i32
    return %arg0, %c0_i32, %c0_i32_0 : i32, i32, i32
  }
}

</mosaic_0001>

<llo_original>
// kernel: tpu_custom_call.1
$region0: #{tpu_custom_call.1}
  #allocation0 [shape = 'u32[]', space=smem, size = 0x4, offset = 0x4, fixed_abs, tag = 'smem constant byte address 0x4 - core index']
  #allocation1 [shape = 'u32[144,128]{1,0:T(1,128)}', space=vmem, size = 0x12000, scoped, tag = 'internal scratch']
  %s0 = inlined_call_operand.vmem [shape: bf16[2,256,27], index: 0, kind: input, shape index: {}]
  %s1 = inlined_call_operand.vmem [shape: bf16[27,128], index: 1, kind: input, shape index: {}]
  %s2 = inlined_call_operand.vmem [shape: f32[1,128], index: 2, kind: input, shape index: {}]
  %s3 = inlined_call_operand.hbm [shape: f32[2,1,128], index: 3, kind: output, shape index: {}]
  %s4 = sld [smem:[#allocation0]]
  $region45: #{tpu_custom_call.1} parent=0
    _
  %s6 = ssub.s32 1, %s4
  %s7 = scalar_select 0, %s6, %s4
  $region1: #{tpu_custom_call.1} parent=0
    #allocation2 [shape = 'u8[1024]{0}', space=vmem, size = 0x400, scoped, tag = 'output window, operand 0']
    #allocation3 [shape = 's32[2]{0}', space=sflag, size = 0x8, scoped, tag = 'scoped memory for tpu_custom_call.1']
    %8 = vsyncpa [#allocation3], 0
    %s9 = scalar_lea.sflag [#allocation3], 1
    %10 = vsyncpa %s9, 0
    loop: start=0, step=1, limit=4
    $region2: #{tpu_custom_call.1} parent=1 // loop_pre_header
      _
    $region3: #{tpu_custom_call.1} parent=1 // loop_header
      %s12 = sphi 0, %s16
      %p13 = scmp.ge.s32.totalorder %s12, 4
      %s22 = sphi 0, %s24
      %s25 = sphi 0, %s22
      %s26 = sphi 0, %s25
      %s42 = sphi 0, %s26
      %s46 = sphi 0, %s46
      %s48 = sphi 0, %s46
      %s49 = sphi 0, %s48
      %s63 = sphi 0, %s49
      %s67 = sphi 0, %s67
      %s69 = sphi 0, %s67
      %s70 = sphi 0, %s69
      %s84 = sphi 0, %s70
      %s90 = sphi 0, %s92
      %s93 = sphi 0, %s90
      %s94 = sphi 0, %s93
      %s110 = sphi 0, %s94
    $region4: #{tpu_custom_call.1} parent=1 // loop_header_branch
      %15 = sbr.rel (%p13) target = $region8
    $region5: #{tpu_custom_call.1} parent=1 // loop_body
      %s17 = ssub.s32 %s12, 1
      %s18 = ssub.s32 %s12, 2
      %s19 = sadd.s32 %s12, 1
      %s20 = ssub.s32 %s12, %s19
      %p21 = scmp.eq.s32.totalorder %s20, 0
      %s23 = sadd.s32 %s22, 1
      %s24 = scalar_select %p21, %s22, %s23
      %p27 = pneg %p21
      %p28 = scmp.eq.s32.totalorder %s12, 1
      %p29 = por %p27, %p28
      %p30 = scmp.ne.s32.totalorder %s22, %s25
      %p31 = scmp.eq.s32.totalorder %s12, 0
      %p32 = por %p30, %p31
      %p33 = scmp.ne.s32.totalorder %s22, %s25
      %p34 = scmp.eq.s32.totalorder %s17, 1
      %p35 = por %p33, %p34
      %p36 = scmp.ne.s32.totalorder %s25, %s26
      %p37 = scmp.eq.s32.totalorder %s17, 0
      %p38 = por %p36, %p37
      %p39 = scmp.ne.s32.totalorder %s25, %s26
      %p40 = scmp.eq.s32.totalorder %s18, 1
      %p41 = por %p39, %p40
      %p43 = scmp.ne.s32.totalorder %s26, %s42
      %p44 = scmp.eq.s32.totalorder %s18, 0
      %p45 = por %p43, %p44
      %s47 = sadd.s32 %s46, 1
      %p50 = scmp.eq.s32.totalorder %s12, 1
      %p51 = scmp.ne.s32.totalorder %s46, %s48
      %p52 = scmp.eq.s32.totalorder %s12, 0
      %p53 = por %p51, %p52
      %p54 = scmp.ne.s32.totalorder %s46, %s48
      %p55 = scmp.eq.s32.totalorder %s17, 1
      %p56 = por %p54, %p55
      %p57 = scmp.ne.s32.totalorder %s48, %s49
      %p58 = scmp.eq.s32.totalorder %s17, 0
      %p59 = por %p57, %p58
      %p60 = scmp.ne.s32.totalorder %s48, %s49
      %p61 = scmp.eq.s32.totalorder %s18, 1
      %p62 = por %p60, %p61
      %p64 = scmp.ne.s32.totalorder %s49, %s63
      %p65 = scmp.eq.s32.totalorder %s18, 0
      %p66 = por %p64, %p65
      %s68 = sadd.s32 %s67, 1
      %p71 = scmp.eq.s32.totalorder %s12, 1
      %p72 = scmp.ne.s32.totalorder %s67, %s69
      %p73 = scmp.eq.s32.totalorder %s12, 0
      %p74 = por %p72, %p73
      %p75 = scmp.ne.s32.totalorder %s67, %s69
      %p76 = scmp.eq.s32.totalorder %s17, 1
      %p77 = por %p75, %p76
      %p78 = scmp.ne.s32.totalorder %s69, %s70
      %p79 = scmp.eq.s32.totalorder %s17, 0
      %p80 = por %p78, %p79
      %p81 = scmp.ne.s32.totalorder %s69, %s70
      %p82 = scmp.eq.s32.totalorder %s18, 1
      %p83 = por %p81, %p82
      %p85 = scmp.ne.s32.totalorder %s70, %s84
      %p86 = scmp.eq.s32.totalorder %s18, 0
      %p87 = por %p85, %p86
      %s88 = ssub.s32 %s12, %s19
      %p89 = scmp.eq.s32.totalorder %s88, 0
      %s91 = sadd.s32 %s90, 1
      %s92 = scalar_select %p89, %s90, %s91
      %p95 = pneg %p89
      %p96 = scmp.eq.s32.totalorder %s12, 1
      %p97 = por %p95, %p96
      %p98 = scmp.ne.s32.totalorder %s90, %s93
      %p99 = scmp.eq.s32.totalorder %s12, 0
      %p100 = por %p98, %p99
      %p101 = scmp.ne.s32.totalorder %s90, %s93
      %p102 = scmp.eq.s32.totalorder %s17, 1
      %p103 = por %p101, %p102
      %p104 = scmp.ne.s32.totalorder %s93, %s94
      %p105 = scmp.eq.s32.totalorder %s17, 0
      %p106 = por %p104, %p105
      %p107 = scmp.ne.s32.totalorder %s93, %s94
      %p108 = scmp.eq.s32.totalorder %s18, 1
      %p109 = por %p107, %p108
      %p111 = scmp.ne.s32.totalorder %s94, %s110
      %p112 = scmp.eq.s32.totalorder %s18, 0
      %p113 = por %p111, %p112
      %p114 = scmp.le.s32.totalorder 1, %s12
      %p115 = scmp.lt.s32.totalorder %s12, 3
      %p116 = pnand %p114, %p115
      %p117 = pneg %p116
      // Predicated region
      $region9: #{tpu_custom_call.1} parent=5 // pred_check
        _
      $region10: #{tpu_custom_call.1} parent=5 // pred_check_branch
        %119 = sbr.rel (%p116) target = $region12
      $region11: #{tpu_custom_call.1} parent=5 // pred_region
        %s120 = ssub.s32 %s12, 1
        // Predicated region
        $region13: #{tpu_custom_call.1} parent=11 // pred_check
          %p121 = pneg %p59
        $region14: #{tpu_custom_call.1} parent=11 // pred_check_branch
          %123 = sbr.rel (%p121) target = $region16
        $region15: #{tpu_custom_call.1} parent=11 // pred_region
          _
        $region16: #{tpu_custom_call.1} parent=11 // pred_fallthru
          _
        // Predicated region
        $region17: #{tpu_custom_call.1} parent=11 // pred_check
          %p124 = pneg %p80
        $region18: #{tpu_custom_call.1} parent=11 // pred_check_branch
          %126 = sbr.rel (%p124) target = $region20
        $region19: #{tpu_custom_call.1} parent=11 // pred_region
          _
        $region20: #{tpu_custom_call.1} parent=11 // pred_fallthru
          _
      $region12: #{tpu_custom_call.1} parent=5 // pred_fallthru
        _
      %p127 = scmp.lt.s32.totalorder %s12, 2
      // Predicated region
      $region21: #{tpu_custom_call.1} parent=5 // pred_check
        %p128 = pneg %p127
      $region22: #{tpu_custom_call.1} parent=5 // pred_check_branch
        %130 = sbr.rel (%p128) target = $region24
      $region23: #{tpu_custom_call.1} parent=5 // pred_region
        // Predicated region
        $region25: #{tpu_custom_call.1} parent=23 // pred_check
          %p131 = pneg %p32
        $region26: #{tpu_custom_call.1} parent=23 // pred_check_branch
          %133 = sbr.rel (%p131) target = $region28
        $region27: #{tpu_custom_call.1} parent=23 // pred_region
          %p134 = scmp.lt.s32.totalorder %s12, 1
          %s135 = scalar_select %p134, %s12, 1
          %s136 = smul.addr %s135, 32
          %s137 = smul.addr %s136, 4
          %s138 = scalar_lea.vmem %s0, %s137
        $region28: #{tpu_custom_call.1} parent=23 // pred_fallthru
          _
      $region24: #{tpu_custom_call.1} parent=5 // pred_fallthru
        _
      %p139 = scmp.le.s32.totalorder 1, %s12
      %p140 = scmp.lt.s32.totalorder %s12, 3
      %p141 = pnand %p139, %p140
      %p142 = pneg %p141
      // Predicated region
      $region29: #{tpu_custom_call.1} parent=5 // pred_check
        _
      $region30: #{tpu_custom_call.1} parent=5 // pred_check_branch
        %144 = sbr.rel (%p141) target = $region32
      $region31: #{tpu_custom_call.1} parent=5 // pred_region
        %s145 = ssub.s32 %s12, 1
        %p146 = scmp.lt.s32.totalorder %s17, 1
        %s147 = scalar_select %p146, %s17, 1
        %s148 = smul.addr %s147, 32
        %s149 = smul.addr %s148, 4
        %s150 = scalar_lea.vmem %s0, %s149
        %p151 = pneg %p38
        %p152 = pneg %p35
        %p153 = pneg %p59
        %p154 = pneg %p56
        %p155 = pneg %p80
        %p156 = pneg %p77
        %p157 = pneg %p106
        %p158 = pneg %p103
        %s159 = sand.u32 %s93, 1
        %s160 = scalar_lea.sflag [#allocation3], %s159
        %s161 = sand.u32 %s93, 1
        %s162 = scalar_lea.vmem [#allocation2], %s161
        %p163 = scmp.lt.s32.totalorder %s17, 1
        %s164 = scalar_select %p163, %s17, 1
        %s165 = smul.addr %s164, 32
        %s166 = smul.addr %s165, 4
        %s167 = scalar_lea.vmem %s0, %s166
        %v169 = vld [vmem:[%s167] sm:$0xf]
        %v170 = vld [vmem:[%s167 + $0x4] sm:$0xf]
        %v171 = vld [vmem:[%s167 + $0x8] sm:$0xf]
        %v172 = vld [vmem:[%s167 + $0xc] sm:$0xf]
        %v173 = vld [vmem:[%s167 + $0x10] sm:$0xf]
        %v174 = vld [vmem:[%s167 + $0x14] sm:$0xf]
        %v175 = vld [vmem:[%s167 + $0x18] sm:$0xf]
        %v176 = vld [vmem:[%s167 + $0x1c] sm:$0xf]
        %v177 = vld [vmem:[%s167 + $0x20] sm:$0xf]
        %v178 = vld [vmem:[%s167 + $0x24] sm:$0xf]
        %v179 = vld [vmem:[%s167 + $0x28] sm:$0xf]
        %v180 = vld [vmem:[%s167 + $0x2c] sm:$0xf]
        %v181 = vld [vmem:[%s167 + $0x30] sm:$0xf]
        %v182 = vld [vmem:[%s167 + $0x34] sm:$0xf]
        %v183 = vld [vmem:[%s167 + $0x38] sm:$0xf]
        %v184 = vld [vmem:[%s167 + $0x3c] sm:$0xf]
        %v185 = vld [vmem:[%s167 + $0x40] sm:$0xf]
        %v186 = vld [vmem:[%s167 + $0x44] sm:$0xf]
        %v187 = vld [vmem:[%s167 + $0x48] sm:$0xf]
        %v188 = vld [vmem:[%s167 + $0x4c] sm:$0xf]
        %v189 = vld [vmem:[%s167 + $0x50] sm:$0xf]
        %v190 = vld [vmem:[%s167 + $0x54] sm:$0xf]
        %v191 = vld [vmem:[%s167 + $0x58] sm:$0xf]
        %v192 = vld [vmem:[%s167 + $0x5c] sm:$0xf]
        %v193 = vld [vmem:[%s167 + $0x60] sm:$0xf]
        %v194 = vld [vmem:[%s167 + $0x64] sm:$0xf]
        %v195 = vld [vmem:[%s167 + $0x68] sm:$0xf]
        %v196 = vld [vmem:[%s167 + $0x6c] sm:$0xf]
        %v197 = vld [vmem:[%s167 + $0x70] sm:$0xf]
        %v198 = vld [vmem:[%s167 + $0x74] sm:$0xf]
        %v199 = vld [vmem:[%s167 + $0x78] sm:$0xf]
        %v200 = vld [vmem:[%s167 + $0x7c] sm:$0xf]
        %v201 = vld [vmem:[%s1] sm:$0xf]
        %v202 = vld [vmem:[%s1 + $0x4] sm:$0xf]
        %v203 = vld [vmem:[%s1 + $0x8] sm:$0xf]
        %v204 = vld [vmem:[%s1 + $0xc] sm:$0x3]
        %v205 = vld [vmem:[%s2] sm:$0x1]
        %v207 = vlaneseq
        %v208 = vshrl.u32 %v207, 7
        %v209 = vsub.s32 0, %v208
        %v210 = vrot.slane %v205, %v209
        %v244 = vunpack.c.l.b16 %v169
        %v245 = vunpack.c.l.b16 %v170
        %v246 = vunpack.c.l.b16 %v171
        %v247 = vunpack.c.l.b16 %v172
        %v248 = vunpack.c.l.b16 %v173
        %v249 = vunpack.c.l.b16 %v174
        %v250 = vunpack.c.l.b16 %v175
        %v251 = vunpack.c.l.b16 %v176
        %v252 = vunpack.c.l.b16 %v177
        %v253 = vunpack.c.l.b16 %v178
        %v254 = vunpack.c.l.b16 %v179
        %v255 = vunpack.c.l.b16 %v180
        %v256 = vunpack.c.l.b16 %v181
        %v257 = vunpack.c.l.b16 %v182
        %v258 = vunpack.c.l.b16 %v183
        %v259 = vunpack.c.l.b16 %v184
        %v260 = vunpack.c.l.b16 %v185
        %v261 = vunpack.c.l.b16 %v186
        %v262 = vunpack.c.l.b16 %v187
        %v263 = vunpack.c.l.b16 %v188
        %v264 = vunpack.c.l.b16 %v189
        %v265 = vunpack.c.l.b16 %v190
        %v266 = vunpack.c.l.b16 %v191
        %v267 = vunpack.c.l.b16 %v192
        %v268 = vunpack.c.l.b16 %v193
        %v269 = vunpack.c.l.b16 %v194
        %v270 = vunpack.c.l.b16 %v195
        %v271 = vunpack.c.l.b16 %v196
        %v272 = vunpack.c.l.b16 %v197
        %v273 = vunpack.c.l.b16 %v198
        %v274 = vunpack.c.l.b16 %v199
        %v275 = vunpack.c.l.b16 %v200
        %v276 = vpack.c.b16 %v245, %v244
        %v277 = vpack.c.b16 %v247, %v246
        %v278 = vpack.c.b16 %v249, %v248
        %v279 = vpack.c.b16 %v251, %v250
        %v280 = vpack.c.b16 %v253, %v252
        %v281 = vpack.c.b16 %v255, %v254
        %v282 = vpack.c.b16 %v257, %v256
        %v283 = vpack.c.b16 %v259, %v258
        %v284 = vpack.c.b16 %v261, %v260
        %v285 = vpack.c.b16 %v263, %v262
        %v286 = vpack.c.b16 %v265, %v264
        %v287 = vpack.c.b16 %v267, %v266
        %v288 = vpack.c.b16 %v269, %v268
        %v289 = vpack.c.b16 %v271, %v270
        %v290 = vpack.c.b16 %v273, %v272
        %v291 = vpack.c.b16 %v275, %v274
        %v296 = vunpack.c.l.b16 %v201
        %v297 = vunpack.c.l.b16 %v202
        %v298 = vunpack.c.l.b16 %v203
        %v299 = vunpack.c.l.b16 %v204
        %v300 = vpack.c.b16 %v297, %v296
        %v301 = vpack.c.b16 %v299, %v298
        %vm303 = vcmask 220160
        %v305 = vsel %vm303, %v276, 0
        %v308 = vsel %vm303, %v277, 0
        %v311 = vsel %vm303, %v278, 0
        %v314 = vsel %vm303, %v279, 0
        %v317 = vsel %vm303, %v280, 0
        %v320 = vsel %vm303, %v281, 0
        %v323 = vsel %vm303, %v282, 0
        %v326 = vsel %vm303, %v283, 0
        %v329 = vsel %vm303, %v284, 0
        %v332 = vsel %vm303, %v285, 0
        %v335 = vsel %vm303, %v286, 0
        %v338 = vsel %vm303, %v287, 0
        %v341 = vsel %vm303, %v288, 0
        %v344 = vsel %vm303, %v289, 0
        %v347 = vsel %vm303, %v290, 0
        %v350 = vsel %vm303, %v291, 0
        %vm352 = vcmask 1044480
        %vm353 = vcmask 1045504
        %v354 = vsel %vm352, 4294967295, 65535
        %v355 = vsel %vm353, %v354, 0
        %v357 = vand.u32 %v301, %v355
        %359 = vmatprep.subr.bf16.mxu0 0
        %360 = vmatpush1.bf16.msra.mxu0 0
        %361 = vmatprep.subr.bf16.mxu0 0
        %362 = vmatpush1.bf16.msra.mxu0 0
        %363 = vmatprep.subr.bf16.mxu0 0
        %364 = vmatpush1.bf16.msra.mxu0 0
        %365 = vmatprep.subr.bf16.mxu0 0
        %366 = vmatpush1.bf16.msra.mxu0 0
        %367 = vmatprep.subr.bf16.mxu0 0
        %368 = vmatpush1.bf16.msra.mxu0 0
        %369 = vmatprep.subr.bf16.mxu0 0
        %370 = vmatpush1.bf16.msra.mxu0 0
        %371 = vmatprep.subr.bf16.mxu0 0
        %372 = vmatpush1.bf16.msra.mxu0 %v357
        %373 = vmatprep.subr.bf16.mxu0 0
        %374 = vmatpush1.bf16.msra.mxu0 %v300
        %375 = vmatprep.subr.bf16.mxu0 0
        %376 = vmatpush2.bf16.msra.mxu0 0
        %377 = vmatprep.subr.bf16.mxu0 0
        %378 = vmatpush2.bf16.msra.mxu0 0
        %379 = vmatprep.subr.bf16.mxu0 0
        %380 = vmatpush2.bf16.msra.mxu0 0
        %381 = vmatprep.subr.bf16.mxu0 0
        %382 = vmatpush2.bf16.msra.mxu0 0
        %383 = vmatprep.subr.bf16.mxu0 0
        %384 = vmatpush2.bf16.msra.mxu0 0
        %385 = vmatprep.subr.bf16.mxu0 0
        %386 = vmatpush2.bf16.msra.mxu0 0
        %387 = vmatprep.subr.bf16.mxu0 0
        %388 = vmatpush2.bf16.msra.mxu0 0
        %389 = vmatprep.subr.bf16.mxu0 0
        %390 = vmatpush2.bf16.msra.mxu0 0
        %391 = vmatprep.mubr.bf16.mxu0 0
        %392 = vmatmul.mubr.bf16.gmra.mxu0 %v305
        %v393 = vpop.f32.mrf.mxu0
        %v394 = vadd.f32 %v210, %v393
        %v395 = vpop.f32.mrf.mxu0
        %v396 = vpop.f32.mrf.mxu0
        %v397 = vadd.f32 %v210, %v396
        %v398 = vpop.f32.mrf.mxu0
        %399 = vmatprep.mubr.bf16.mxu0 0
        %400 = vmatmul.mubr.bf16.gmra.mxu0 %v308
        %v401 = vpop.f32.mrf.mxu0
        %v402 = vadd.f32 %v210, %v401
        %v403 = vpop.f32.mrf.mxu0
        %v404 = vpop.f32.mrf.mxu0
        %v405 = vadd.f32 %v210, %v404
        %v406 = vpop.f32.mrf.mxu0
        %407 = vmatprep.mubr.bf16.mxu0 0
        %408 = vmatmul.mubr.bf16.gmra.mxu0 %v311
        %v409 = vpop.f32.mrf.mxu0
        %v410 = vadd.f32 %v210, %v409
        %v411 = vpop.f32.mrf.mxu0
        %v412 = vpop.f32.mrf.mxu0
        %v413 = vadd.f32 %v210, %v412
        %v414 = vpop.f32.mrf.mxu0
        %415 = vmatprep.mubr.bf16.mxu0 0
        %416 = vmatmul.mubr.bf16.gmra.mxu0 %v314
        %v417 = vpop.f32.mrf.mxu0
        %v418 = vadd.f32 %v210, %v417
        %v419 = vpop.f32.mrf.mxu0
        %v420 = vpop.f32.mrf.mxu0
        %v421 = vadd.f32 %v210, %v420
        %v422 = vpop.f32.mrf.mxu0
        %423 = vmatprep.mubr.bf16.mxu0 0
        %424 = vmatmul.mubr.bf16.gmra.mxu0 %v317
        %v425 = vpop.f32.mrf.mxu0
        %v426 = vadd.f32 %v210, %v425
        %v427 = vpop.f32.mrf.mxu0
        %v428 = vpop.f32.mrf.mxu0
        %v429 = vadd.f32 %v210, %v428
        %v430 = vpop.f32.mrf.mxu0
        %431 = vmatprep.mubr.bf16.mxu0 0
        %432 = vmatmul.mubr.bf16.gmra.mxu0 %v320
        %v433 = vpop.f32.mrf.mxu0
        %v434 = vadd.f32 %v210, %v433
        %v435 = vpop.f32.mrf.mxu0
        %v436 = vpop.f32.mrf.mxu0
        %v437 = vadd.f32 %v210, %v436
        %v438 = vpop.f32.mrf.mxu0
        %439 = vmatprep.mubr.bf16.mxu0 0
        %440 = vmatmul.mubr.bf16.gmra.mxu0 %v323
        %v441 = vpop.f32.mrf.mxu0
        %v442 = vadd.f32 %v210, %v441
        %v443 = vpop.f32.mrf.mxu0
        %v444 = vpop.f32.mrf.mxu0
        %v445 = vadd.f32 %v210, %v444
        %v446 = vpop.f32.mrf.mxu0
        %447 = vmatprep.mubr.bf16.mxu0 0
        %448 = vmatmul.mubr.bf16.gmra.mxu0 %v326
        %v449 = vpop.f32.mrf.mxu0
        %v450 = vadd.f32 %v210, %v449
        %v451 = vpop.f32.mrf.mxu0
        %v452 = vpop.f32.mrf.mxu0
        %v453 = vadd.f32 %v210, %v452
        %v454 = vpop.f32.mrf.mxu0
        %455 = vmatprep.mubr.bf16.mxu0 0
        %456 = vmatmul.mubr.bf16.gmra.mxu0 %v329
        %v457 = vpop.f32.mrf.mxu0
        %v458 = vadd.f32 %v210, %v457
        %v459 = vpop.f32.mrf.mxu0
        %v460 = vpop.f32.mrf.mxu0
        %v461 = vadd.f32 %v210, %v460
        %v462 = vpop.f32.mrf.mxu0
        %463 = vmatprep.mubr.bf16.mxu0 0
        %464 = vmatmul.mubr.bf16.gmra.mxu0 %v332
        %v465 = vpop.f32.mrf.mxu0
        %v466 = vadd.f32 %v210, %v465
        %v467 = vpop.f32.mrf.mxu0
        %v468 = vpop.f32.mrf.mxu0
        %v469 = vadd.f32 %v210, %v468
        %v470 = vpop.f32.mrf.mxu0
        %471 = vmatprep.mubr.bf16.mxu0 0
        %472 = vmatmul.mubr.bf16.gmra.mxu0 %v335
        %v473 = vpop.f32.mrf.mxu0
        %v474 = vadd.f32 %v210, %v473
        %v475 = vpop.f32.mrf.mxu0
        %v476 = vpop.f32.mrf.mxu0
        %v477 = vadd.f32 %v210, %v476
        %v478 = vpop.f32.mrf.mxu0
        %479 = vmatprep.mubr.bf16.mxu0 0
        %480 = vmatmul.mubr.bf16.gmra.mxu0 %v338
        %v481 = vpop.f32.mrf.mxu0
        %v482 = vadd.f32 %v210, %v481
        %v483 = vpop.f32.mrf.mxu0
        %v484 = vpop.f32.mrf.mxu0
        %v485 = vadd.f32 %v210, %v484
        %v486 = vpop.f32.mrf.mxu0
        %487 = vmatprep.mubr.bf16.mxu0 0
        %488 = vmatmul.mubr.bf16.gmra.mxu0 %v341
        %v489 = vpop.f32.mrf.mxu0
        %v490 = vadd.f32 %v210, %v489
        %v491 = vpop.f32.mrf.mxu0
        %v492 = vpop.f32.mrf.mxu0
        %v493 = vadd.f32 %v210, %v492
        %v494 = vpop.f32.mrf.mxu0
        %495 = vmatprep.mubr.bf16.mxu0 0
        %496 = vmatmul.mubr.bf16.gmra.mxu0 %v344
        %v497 = vpop.f32.mrf.mxu0
        %v498 = vadd.f32 %v210, %v497
        %v499 = vpop.f32.mrf.mxu0
        %v500 = vpop.f32.mrf.mxu0
        %v501 = vadd.f32 %v210, %v500
        %v502 = vpop.f32.mrf.mxu0
        %503 = vmatprep.mubr.bf16.mxu0 0
        %504 = vmatmul.mubr.bf16.gmra.mxu0 %v347
        %v505 = vpop.f32.mrf.mxu0
        %v506 = vadd.f32 %v210, %v505
        %v507 = vpop.f32.mrf.mxu0
        %v508 = vpop.f32.mrf.mxu0
        %v509 = vadd.f32 %v210, %v508
        %v510 = vpop.f32.mrf.mxu0
        %511 = vmatprep.mubr.bf16.mxu0 0
        %512 = vmatmul.mubr.bf16.gmra.mxu0 %v350
        %v513 = vpop.f32.mrf.mxu0
        %v514 = vadd.f32 %v210, %v513
        %v515 = vpop.f32.mrf.mxu0
        %v516 = vpop.f32.mrf.mxu0
        %v517 = vadd.f32 %v210, %v516
        %v518 = vpop.f32.mrf.mxu0
        %519 = vdwg.mxu0
        %v520 = vmax.f32 %v394, 0.0
        %v521 = vmax.f32 %v397, 0.0
        %v522 = vmax.f32 %v402, 0.0
        %v523 = vmax.f32 %v405, 0.0
        %v524 = vmax.f32 %v410, 0.0
        %v525 = vmax.f32 %v413, 0.0
        %v526 = vmax.f32 %v418, 0.0
        %v527 = vmax.f32 %v421, 0.0
        %v528 = vmax.f32 %v426, 0.0
        %v529 = vmax.f32 %v429, 0.0
        %v530 = vmax.f32 %v434, 0.0
        %v531 = vmax.f32 %v437, 0.0
        %v532 = vmax.f32 %v442, 0.0
        %v533 = vmax.f32 %v445, 0.0
        %v534 = vmax.f32 %v450, 0.0
        %v535 = vmax.f32 %v453, 0.0
        %v536 = vmax.f32 %v458, 0.0
        %v537 = vmax.f32 %v461, 0.0
        %v538 = vmax.f32 %v466, 0.0
        %v539 = vmax.f32 %v469, 0.0
        %v540 = vmax.f32 %v474, 0.0
        %v541 = vmax.f32 %v477, 0.0
        %v542 = vmax.f32 %v482, 0.0
        %v543 = vmax.f32 %v485, 0.0
        %v544 = vmax.f32 %v490, 0.0
        %v545 = vmax.f32 %v493, 0.0
        %v546 = vmax.f32 %v498, 0.0
        %v547 = vmax.f32 %v501, 0.0
        %v548 = vmax.f32 %v506, 0.0
        %v549 = vmax.f32 %v509, 0.0
        %v550 = vmax.f32 %v514, 0.0
        %v551 = vmax.f32 %v517, 0.0
        %552 = vmatprep.subr.mxu0 0.0
        %553 = vmatpush1.msra.mxu0 %v535
        %554 = vmatprep.subr.mxu0 0.0
        %555 = vmatpush1.msra.mxu0 %v534
        %556 = vmatprep.subr.mxu0 0.0
        %557 = vmatpush1.msra.mxu0 %v533
        %558 = vmatprep.subr.mxu0 0.0
        %559 = vmatpush1.msra.mxu0 %v532
        %560 = vmatprep.subr.mxu0 0.0
        %561 = vmatpush1.msra.mxu0 %v531
        %562 = vmatprep.subr.mxu0 0.0
        %563 = vmatpush1.msra.mxu0 %v530
        %564 = vmatprep.subr.mxu0 0.0
        %565 = vmatpush1.msra.mxu0 %v529
        %566 = vmatprep.subr.mxu0 0.0
        %567 = vmatpush1.msra.mxu0 %v528
        %568 = vmatprep.subr.mxu0 0.0
        %569 = vmatpush1.msra.mxu0 %v527
        %570 = vmatprep.subr.mxu0 0.0
        %571 = vmatpush1.msra.mxu0 %v526
        %572 = vmatprep.subr.mxu0 0.0
        %573 = vmatpush1.msra.mxu0 %v525
        %574 = vmatprep.subr.mxu0 0.0
        %575 = vmatpush1.msra.mxu0 %v524
        %576 = vmatprep.subr.mxu0 0.0
        %577 = vmatpush1.msra.mxu0 %v523
        %578 = vmatprep.subr.mxu0 0.0
        %579 = vmatpush1.msra.mxu0 %v522
        %580 = vmatprep.subr.mxu0 0.0
        %581 = vmatpush1.msra.mxu0 %v521
        %582 = vmatprep.subr.mxu0 0.0
        %583 = vmatpush1.msra.mxu0 %v520
        %584 = vmatprep.subr.mxu0 0.0
        %585 = vmatpush2.msra.mxu0 %v551
        %586 = vmatprep.subr.mxu0 0.0
        %587 = vmatpush2.msra.mxu0 %v550
        %588 = vmatprep.subr.mxu0 0.0
        %589 = vmatpush2.msra.mxu0 %v549
        %590 = vmatprep.subr.mxu0 0.0
        %591 = vmatpush2.msra.mxu0 %v548
        %592 = vmatprep.subr.mxu0 0.0
        %593 = vmatpush2.msra.mxu0 %v547
        %594 = vmatprep.subr.mxu0 0.0
        %595 = vmatpush2.msra.mxu0 %v546
        %596 = vmatprep.subr.mxu0 0.0
        %597 = vmatpush2.msra.mxu0 %v545
        %598 = vmatprep.subr.mxu0 0.0
        %599 = vmatpush2.msra.mxu0 %v544
        %600 = vmatprep.subr.mxu0 0.0
        %601 = vmatpush2.msra.mxu0 %v543
        %602 = vmatprep.subr.mxu0 0.0
        %603 = vmatpush2.msra.mxu0 %v542
        %604 = vmatprep.subr.mxu0 0.0
        %605 = vmatpush2.msra.mxu0 %v541
        %606 = vmatprep.subr.mxu0 0.0
        %607 = vmatpush2.msra.mxu0 %v540
        %608 = vmatprep.subr.mxu0 0.0
        %609 = vmatpush2.msra.mxu0 %v539
        %610 = vmatprep.subr.mxu0 0.0
        %611 = vmatpush2.msra.mxu0 %v538
        %612 = vmatprep.subr.mxu0 0.0
        %613 = vmatpush2.msra.mxu0 %v537
        %614 = vmatprep.subr.mxu0 0.0
        %615 = vmatpush2.msra.mxu0 %v536
        %616 = vmatprep.mubr.f32.mxu0 0.00390625
        %617 = vmatmul.mubr.f32.gmra.mxu0 0.00390625
        %v618 = vpop.f32.mrf.mxu0
        %v619 = vadd.f32 0.0, %v618
        %v620 = vpop.f32.mrf.mxu0
        %621 = vdwg.mxu0
        %622 = vst [vmem:[%s162] sm:$0x1] %v619
        %s623 = sand.u32 %s93, 1
        %s624 = scalar_lea.sflag [#allocation3], %s623
        %s625 = sand.u32 %s93, 1
        %s626 = scalar_lea.vmem [#allocation2], %s625
        // Predicated region
        $region33: #{tpu_custom_call.1} parent=31 // pred_check
          %p627 = pneg %p103
        $region34: #{tpu_custom_call.1} parent=31 // pred_check_branch
          %629 = sbr.rel (%p627) target = $region36
        $region35: #{tpu_custom_call.1} parent=31 // pred_region
          %s631 = ssub.s32 16, 16
          %632 = vsyncadd %s624, %s631
          %s633 = smul.addr %s17, 16
          %s634 = scalar_lea.hbm %s3, %s633
          %s636 = sshll.u32 %s626, 4
          %s637 = int_to_ptr.vmem [resolvable:$true] %s636
          %639 = dma.vmem_to_hbm [thread:$0]  %s637, 16, %s634, %s624
        $region36: #{tpu_custom_call.1} parent=31 // pred_fallthru
          _
      $region32: #{tpu_custom_call.1} parent=5 // pred_fallthru
        _
      %p640 = scmp.le.s32.totalorder 2, %s12
      // Predicated region
      $region37: #{tpu_custom_call.1} parent=5 // pred_check
        %p641 = pneg %p640
      $region38: #{tpu_custom_call.1} parent=5 // pred_check_branch
        %643 = sbr.rel (%p641) target = $region40
      $region39: #{tpu_custom_call.1} parent=5 // pred_region
        %s644 = ssub.s32 %s12, 2
        // Predicated region
        $region41: #{tpu_custom_call.1} parent=39 // pred_check
          %p645 = pneg %p109
        $region42: #{tpu_custom_call.1} parent=39 // pred_check_branch
          %647 = sbr.rel (%p645) target = $region44
        $region43: #{tpu_custom_call.1} parent=39 // pred_region
          %s648 = sand.u32 %s94, 1
          %s649 = scalar_lea.sflag [#allocation3], %s648
          %s650 = sand.u32 %s94, 1
          %s651 = scalar_lea.vmem [#allocation2], %s650
          %652 = dma.done %s649, 16
        $region44: #{tpu_custom_call.1} parent=39 // pred_fallthru
          _
      $region40: #{tpu_custom_call.1} parent=5 // pred_fallthru
        _
    $region6: #{tpu_custom_call.1} parent=1 // loop_footer
      %s16 = sadd.s32 1, %s12
    $region7: #{tpu_custom_call.1} parent=1 // loop_footer_branch
      %11 = sbr.rel target = $region3
    $region8: #{tpu_custom_call.1} parent=1 // loop_exit
      _
    %653 = vsyncpa [#allocation3], 1
    %s654 = scalar_lea.sflag [#allocation3], 1
    %655 = vsyncpa %s654, 1

</llo_original>
